<compile_context>
chip_gen: v7x
topology: tpu7x:2x2x1
jax: 0.10.0
libtpu: 0.0.40
codegen_flags: <defaults>
</compile_context>

<pallas_src>
import jax
import jax.numpy as jnp
from jax.experimental import pallas as pl
from jax.experimental.pallas import tpu as pltpu


def afm_kernel(x_ref, w_linv_ref, w_vsq_ref, attn_ref, bias_ref, out_ref):
    """One batch tile of the AFM forward pass, transposed ([Kp, TB]) orientation.

    x_ref      : [D, TB]      bf16   feature^T (lane-dense batch)
    w_linv_ref : [2Kp, D]     bf16   [fc_w^T ; fm_V^T], K rows padded to Kp
    w_vsq_ref  : [Kp, D]      bf16   (fm_V^2)^T, padded
    attn_ref   : [2Kp, Kp]    bf16   [aw_w^T ; ad_w^T], padded
    bias_ref   : [3Kp, 1]     f32    [fc_b ; aw_b ; ad_b], ad_b pad rows = -1e30
    out_ref    : [1, TB]      f32    lane-dense row of per-example outputs
    """
    Kp = w_vsq_ref.shape[0]

    x_bf = x_ref[...]                                   # [D, TB] bf16
    x_f32 = x_bf.astype(jnp.float32)
    xsq_bf = (x_f32 * x_f32).astype(jnp.bfloat16)       # square in f32, feed MXU in bf16

    # ---- FM layer: two MXU calls (linear + xV, and x^2 @ V^2) ----
    lin_v = jnp.dot(w_linv_ref[...], x_bf,
                    preferred_element_type=jnp.float32)          # [2Kp, TB]
    inter2 = jnp.dot(w_vsq_ref[...], xsq_bf,
                     preferred_element_type=jnp.float32)         # [Kp, TB]

    fc_b = bias_ref[0:Kp, :]                                      # [Kp, 1]
    aw_b = bias_ref[Kp:2 * Kp, :]
    ad_b = bias_ref[2 * Kp:3 * Kp, :]                             # pad rows = -1e30

    fm_linear = lin_v[0:Kp, :] + fc_b                             # (x @ fc_w + b)^T
    xv = lin_v[Kp:2 * Kp, :]                                      # (x @ V)^T
    # Faithful to the source module: linear + inter1 * inter2 (elementwise
    # product, not the canonical 0.5*(inter1 - inter2)).
    fm_inter = fm_linear + (xv * xv) * inter2                     # [Kp, TB]; pad rows = 0

    # ---- Attention layer (still transposed) ----
    fm_bf = fm_inter.astype(jnp.bfloat16)
    atten = jnp.dot(attn_ref[0:Kp, :], fm_bf,
                    preferred_element_type=jnp.float32) + aw_b    # [Kp, TB]
    atten = jnp.maximum(atten, 0.0)                               # relu
    scores = jnp.dot(attn_ref[Kp:2 * Kp, :], atten.astype(jnp.bfloat16),
                     preferred_element_type=jnp.float32) + ad_b   # pad rows ~ -1e30

    # softmax over Kp (sublane axis); padded rows contribute exp(-1e30-m)=0.
    m = jnp.max(scores, axis=0, keepdims=True)                    # [1, TB]
    e = jnp.exp(scores - m)
    w = e * pl.reciprocal(jnp.sum(e, axis=0, keepdims=True), approx=True)

    # atten_out = sum_k(w * fm_interaction) -> lane-dense [1, TB] store
    out_ref[...] = jnp.sum(w * fm_inter, axis=0, keepdims=True)


def _round_up(v, m):
    return ((v + m - 1) // m) * m


def afm_forward(feature, packed, *, block_b=256):
    """feature: [B, D] (any float dtype). Returns [B, 1] f32."""
    B, D = feature.shape
    Kp = int(packed["k_pad"])

    # Batch tiling:
    #  * tiny B: single full-extent tile (launch-bound regardless)
    #  * 16 < B <= 256: lane-dense tb=128
    #  * B > 256: at least 2 tiles (v7x dual-TC), tb capped at block_b
    if B <= 16:
        tb = max(8, _round_up(B, 8))
    elif B <= 256:
        tb = 128
    else:
        tb = min(block_b, max(128, _round_up(pl.cdiv(B, 2), 128)))
    bp = pl.cdiv(B, tb) * tb

    # Single transpose + bf16 cast of the feature stream (no concat / x*x here).
    x_t = feature.T.astype(jnp.bfloat16)                          # [D, B]
    if bp != B:
        x_t = jnp.pad(x_t, ((0, 0), (0, bp - B)))

    grid = (bp // tb,)
    flops = 2 * bp * D * (3 * Kp) + 2 * (2 * bp * Kp * Kp)
    bytes_accessed = (x_t.size * 2 + packed["w_linv_t"].size * 2
                      + packed["w_vsq_t"].size * 2 + packed["attn_w_t"].size * 2
                      + packed["bias_t"].size * 4 + bp * 4)

    out = pl.pallas_call(
        afm_kernel,
        out_shape=jax.ShapeDtypeStruct((1, bp), jnp.float32),
        grid_spec=pltpu.PrefetchScalarGridSpec(
            num_scalar_prefetch=0,
            grid=grid,
            in_specs=[
                pl.BlockSpec((D, tb), lambda i: (0, i)),            # feature stream
                pl.BlockSpec((2 * Kp, D), lambda i: (0, 0)),        # VMEM-resident weights
                pl.BlockSpec((Kp, D), lambda i: (0, 0)),
                pl.BlockSpec((2 * Kp, Kp), lambda i: (0, 0)),
                pl.BlockSpec((3 * Kp, 1), lambda i: (0, 0)),
            ],
            out_specs=pl.BlockSpec((1, tb), lambda i: (0, i)),
        ),
        compiler_params=pltpu.CompilerParams(
            dimension_semantics=("parallel",),                      # megacore / v7x 2-TC
        ),
        cost_estimate=pl.CostEstimate(
            flops=int(flops),
            transcendentals=int(bp * Kp),
            bytes_accessed=int(bytes_accessed)),
    )(x_t, packed["w_linv_t"], packed["w_vsq_t"], packed["attn_w_t"],
      packed["bias_t"])

    return out[0, :B].reshape(B, 1)


def init_params(key, dim, k):
    """Matches the module's init_weight(): weights ~ U(-0.05, 0.05), biases = 0.
    Weights stored in math orientation ([in, out]) so y = x @ W + b."""
    ks = jax.random.split(key, 4)
    u = lambda kk, shape: jax.random.uniform(kk, shape, jnp.float32, -0.05, 0.05)
    return {
        "fc_w": u(ks[0], (dim, k)),
        "fc_b": jnp.zeros((1, k), jnp.float32),
        "fm_V": u(ks[1], (dim, k)),
        "aw_w": u(ks[2], (k, k)),
        "aw_b": jnp.zeros((1, k), jnp.float32),
        "ad_w": u(ks[3], (k, k)),
        "ad_b": jnp.zeros((1, k), jnp.float32),
        # b_users / b_items exist in the module but are unused in forward().
    }


def pack_params(p, k_pad=32):
    """Pre-pack parameters once (outside the hot path):
      * K padded to Kp (multiple of 8, default 32) so every in-kernel row slice
        is sublane-tile aligned,
      * fm_V**2 precomputed,
      * MXU operands cast to bf16,
      * padded rows of the final attention bias set to -1e30 so softmax over Kp
        exactly matches softmax over the real K rows."""
    D, K = p["fc_w"].shape
    Kp = max(_round_up(K, 8), _round_up(k_pad, 8))
    pad = Kp - K

    pad_rows = lambda m: jnp.pad(m, ((0, pad), (0, 0)))               # [K,*] -> [Kp,*]
    pad_attn = lambda m: jnp.pad(m, ((0, pad), (0, pad)))             # [K,K] -> [Kp,Kp]

    w_linv_t = jnp.concatenate(
        [pad_rows(p["fc_w"].T), pad_rows(p["fm_V"].T)],
        axis=0).astype(jnp.bfloat16)                                  # [2Kp, D]
    w_vsq_t = pad_rows((p["fm_V"] ** 2).T).astype(jnp.bfloat16)       # [Kp, D]
    attn_w_t = jnp.concatenate(
        [pad_attn(p["aw_w"].T), pad_attn(p["ad_w"].T)],
        axis=0).astype(jnp.bfloat16)                                  # [2Kp, Kp]

    neg = jnp.full((pad, 1), -1e30, jnp.float32)
    bias_t = jnp.concatenate([
        pad_rows(p["fc_b"].T),
        pad_rows(p["aw_b"].T),
        jnp.concatenate([p["ad_b"].T, neg], axis=0),
    ], axis=0).astype(jnp.float32)                                    # [3Kp, 1]

    return {"w_linv_t": w_linv_t, "w_vsq_t": w_vsq_t,
            "attn_w_t": attn_w_t, "bias_t": bias_t, "k_pad": Kp}


def afm_reference(feature, p):
    """Pure-JAX f32 reference, mirroring the PyTorch module exactly."""
    x = feature.astype(jnp.float32)
    fm_linear = x @ p["fc_w"] + p["fc_b"]
    inter1 = (x @ p["fm_V"]) ** 2
    inter2 = (x ** 2) @ (p["fm_V"] ** 2)
    fm_inter = fm_linear + inter1 * inter2
    atten = jax.nn.relu(fm_inter @ p["aw_w"] + p["aw_b"])
    scores = atten @ p["ad_w"] + p["ad_b"]
    w = jax.nn.softmax(scores, axis=1)
    return jnp.sum(w * fm_inter, axis=1, keepdims=True)


if __name__ == "__main__":
    DIM = 32          # config.after_fusion_dim
    K = 20            # self.k

    key = jax.random.PRNGKey(0)
    pkey, xkey, xkey2 = jax.random.split(key, 3)
    params = init_params(pkey, DIM, K)
    packed = pack_params(params)

    # Small batch (module's nominal b=1/2 case): single grid tile.
    B = 2
    feature = jax.random.normal(xkey, (B, DIM), jnp.float32)
    out = jax.block_until_ready(afm_forward(feature, packed))
    ref = afm_reference(feature, params)
    assert out.shape == (B, 1)
    # bf16 MXU operands + approx reciprocal -> relaxed tolerance vs f32 reference.
    assert jnp.allclose(out, ref, rtol=5e-2, atol=1e-2), (out, ref)

    # Larger batch: exercises the multi-tile batch grid (2 tiles + padding).
    B2 = 300
    feature2 = jax.random.normal(xkey2, (B2, DIM), jnp.float32)
    out2 = jax.block_until_ready(afm_forward(feature2, packed))
    ref2 = afm_reference(feature2, params)
    assert out2.shape == (B2, 1)
    assert jnp.allclose(out2, ref2, rtol=5e-2, atol=1e-2), \
        float(jnp.max(jnp.abs(out2 - ref2)))

    print("KERNEL_OK")
</pallas_src>

<mosaic_0001>
module attributes {stable_mosaic.version = 11 : i64} {
  func.func @afm_kernel(%arg0: i32, %arg1: memref<32x8xbf16, #tpu.memory_space<vmem>>, %arg2: memref<64x32xbf16, #tpu.memory_space<vmem>>, %arg3: memref<32x32xbf16, #tpu.memory_space<vmem>>, %arg4: memref<64x32xbf16, #tpu.memory_space<vmem>>, %arg5: memref<96x1xf32, #tpu.memory_space<vmem>>, %arg6: memref<1x8xf32, #tpu.memory_space<vmem>>) attributes {dimension_semantics = [#tpu.dimension_semantics<parallel>], iteration_bounds = array<i64: 1>, scalar_prefetch = 0 : i64, scratch_operands = 0 : i64, tpu.core_type = #tpu.core_type<tc>, window_params = [{transform_indices = @transform_0, window_bounds = array<i64: 32, 8>}, {pipeline_mode = #tpu.pipeline_mode<synchronous>, transform_indices = @transform_1, window_bounds = array<i64: 64, 32>}, {pipeline_mode = #tpu.pipeline_mode<synchronous>, transform_indices = @transform_2, window_bounds = array<i64: 32, 32>}, {pipeline_mode = #tpu.pipeline_mode<synchronous>, transform_indices = @transform_3, window_bounds = array<i64: 64, 32>}, {pipeline_mode = #tpu.pipeline_mode<synchronous>, transform_indices = @transform_4, window_bounds = array<i64: 96, 1>}, {transform_indices = @transform_5, window_bounds = array<i64: 1, 8>}]} {
    %c0 = arith.constant 0 : index
    %c0_0 = arith.constant 0 : index
    %0 = vector.load %arg1[%c0, %c0_0] : memref<32x8xbf16, #tpu.memory_space<vmem>>, vector<32x8xbf16>
    %1 = arith.extf %0 : vector<32x8xbf16> to vector<32x8xf32>
    %2 = arith.mulf %1, %1 : vector<32x8xf32>
    %3 = arith.truncf %2 : vector<32x8xf32> to vector<32x8xbf16>
    %c0_1 = arith.constant 0 : index
    %c0_2 = arith.constant 0 : index
    %4 = vector.load %arg2[%c0_1, %c0_2] : memref<64x32xbf16, #tpu.memory_space<vmem>>, vector<64x32xbf16>
    %cst = arith.constant dense<0.000000e+00> : vector<64x8xf32>
    %5 = tpu.matmul %4, %0, %cst {dimension_numbers = #tpu.dot_dimension_numbers<[1], [0], [0], [1], [0, 0, 1, 1], [], []>} : vector<64x32xbf16>, vector<32x8xbf16>, vector<64x8xf32> -> vector<64x8xf32>
    %c0_3 = arith.constant 0 : index
    %c0_4 = arith.constant 0 : index
    %6 = vector.load %arg3[%c0_3, %c0_4] : memref<32x32xbf16, #tpu.memory_space<vmem>>, vector<32x32xbf16>
    %cst_5 = arith.constant dense<0.000000e+00> : vector<32x8xf32>
    %7 = tpu.matmul %6, %3, %cst_5 {dimension_numbers = #tpu.dot_dimension_numbers<[1], [0], [0], [1], [0, 0, 1, 1], [], []>} : vector<32x32xbf16>, vector<32x8xbf16>, vector<32x8xf32> -> vector<32x8xf32>
    %c0_6 = arith.constant 0 : index
    %c0_7 = arith.constant 0 : index
    %8 = vector.load %arg5[%c0_6, %c0_7] : memref<96x1xf32, #tpu.memory_space<vmem>>, vector<32x1xf32>
    %c32 = arith.constant 32 : index
    %c0_8 = arith.constant 0 : index
    %9 = vector.load %arg5[%c32, %c0_8] : memref<96x1xf32, #tpu.memory_space<vmem>>, vector<32x1xf32>
    %c64 = arith.constant 64 : index
    %c0_9 = arith.constant 0 : index
    %10 = vector.load %arg5[%c64, %c0_9] : memref<96x1xf32, #tpu.memory_space<vmem>>, vector<32x1xf32>
    %11 = vector.extract_strided_slice %5 {offsets = [0, 0], sizes = [32, 8], strides = [1, 1]} : vector<64x8xf32> to vector<32x8xf32>
    %12 = vector.broadcast %8 : vector<32x1xf32> to vector<32x8xf32>
    %13 = arith.addf %11, %12 : vector<32x8xf32>
    %14 = vector.extract_strided_slice %5 {offsets = [32, 0], sizes = [32, 8], strides = [1, 1]} : vector<64x8xf32> to vector<32x8xf32>
    %15 = arith.mulf %14, %14 : vector<32x8xf32>
    %16 = arith.mulf %15, %7 : vector<32x8xf32>
    %17 = arith.addf %13, %16 : vector<32x8xf32>
    %18 = arith.truncf %17 : vector<32x8xf32> to vector<32x8xbf16>
    %c0_10 = arith.constant 0 : index
    %c0_11 = arith.constant 0 : index
    %19 = vector.load %arg4[%c0_10, %c0_11] : memref<64x32xbf16, #tpu.memory_space<vmem>>, vector<32x32xbf16>
    %cst_12 = arith.constant dense<0.000000e+00> : vector<32x8xf32>
    %20 = tpu.matmul %19, %18, %cst_12 {dimension_numbers = #tpu.dot_dimension_numbers<[1], [0], [0], [1], [0, 0, 1, 1], [], []>} : vector<32x32xbf16>, vector<32x8xbf16>, vector<32x8xf32> -> vector<32x8xf32>
    %21 = vector.broadcast %9 : vector<32x1xf32> to vector<32x8xf32>
    %22 = arith.addf %20, %21 : vector<32x8xf32>
    %cst_13 = arith.constant 0.000000e+00 : f32
    %23 = vector.broadcast %cst_13 : f32 to vector<32x8xf32>
    %24 = arith.maximumf %22, %23 : vector<32x8xf32>
    %c32_14 = arith.constant 32 : index
    %c0_15 = arith.constant 0 : index
    %25 = vector.load %arg4[%c32_14, %c0_15] : memref<64x32xbf16, #tpu.memory_space<vmem>>, vector<32x32xbf16>
    %26 = arith.truncf %24 : vector<32x8xf32> to vector<32x8xbf16>
    %cst_16 = arith.constant dense<0.000000e+00> : vector<32x8xf32>
    %27 = tpu.matmul %25, %26, %cst_16 {dimension_numbers = #tpu.dot_dimension_numbers<[1], [0], [0], [1], [0, 0, 1, 1], [], []>} : vector<32x32xbf16>, vector<32x8xbf16>, vector<32x8xf32> -> vector<32x8xf32>
    %28 = vector.broadcast %10 : vector<32x1xf32> to vector<32x8xf32>
    %29 = arith.addf %27, %28 : vector<32x8xf32>
    %cst_17 = arith.constant dense<0xFF800000> : vector<8xf32>
    %30 = vector.multi_reduction <maximumf>, %29, %cst_17 [0] : vector<32x8xf32> to vector<8xf32>
    %31 = vector.shape_cast %30 : vector<8xf32> to vector<1x8xf32>
    %32 = vector.broadcast %31 : vector<1x8xf32> to vector<32x8xf32>
    %33 = arith.subf %29, %32 : vector<32x8xf32>
    %34 = math.exp %33 : vector<32x8xf32>
    %cst_18 = arith.constant dense<0.000000e+00> : vector<8xf32>
    %35 = vector.multi_reduction <add>, %34, %cst_18 [0] : vector<32x8xf32> to vector<8xf32>
    %36 = vector.shape_cast %35 : vector<8xf32> to vector<1x8xf32>
    %37 = tpu.reciprocal %36 {approx = true} : vector<1x8xf32> -> vector<1x8xf32>
    %38 = vector.broadcast %37 : vector<1x8xf32> to vector<32x8xf32>
    %39 = arith.mulf %34, %38 : vector<32x8xf32>
    %40 = arith.mulf %39, %17 : vector<32x8xf32>
    %cst_19 = arith.constant dense<0.000000e+00> : vector<8xf32>
    %41 = vector.multi_reduction <add>, %40, %cst_19 [0] : vector<32x8xf32> to vector<8xf32>
    %42 = vector.shape_cast %41 : vector<8xf32> to vector<1x8xf32>
    %c0_20 = arith.constant 0 : index
    %c0_21 = arith.constant 0 : index
    %43 = vector.load %arg6[%c0_20, %c0_21] : memref<1x8xf32, #tpu.memory_space<vmem>>, vector<1x8xf32>
    tpu.vector_store %arg6[%c0_20, %c0_21], %42 {strides = array<i32>} : memref<1x8xf32, #tpu.memory_space<vmem>>, vector<1x8xf32>,
    return
  }
  func.func @transform_0(%arg0: i32) -> (i32, i32) {
    %c0_i32 = arith.constant 0 : i32
    %c0_i32_0 = arith.constant 0 : i32
    return %c0_i32, %arg0 : i32, i32
  }
  func.func @transform_1(%arg0: i32) -> (i32, i32) {
    %c0_i32 = arith.constant 0 : i32
    %c0_i32_0 = arith.constant 0 : i32
    %c0_i32_1 = arith.constant 0 : i32
    return %c0_i32, %c0_i32_0 : i32, i32
  }
  func.func @transform_2(%arg0: i32) -> (i32, i32) {
    %c0_i32 = arith.constant 0 : i32
    %c0_i32_0 = arith.constant 0 : i32
    %c0_i32_1 = arith.constant 0 : i32
    return %c0_i32, %c0_i32_0 : i32, i32
  }
  func.func @transform_3(%arg0: i32) -> (i32, i32) {
    %c0_i32 = arith.constant 0 : i32
    %c0_i32_0 = arith.constant 0 : i32
    %c0_i32_1 = arith.constant 0 : i32
    return %c0_i32, %c0_i32_0 : i32, i32
  }
  func.func @transform_4(%arg0: i32) -> (i32, i32) {
    %c0_i32 = arith.constant 0 : i32
    %c0_i32_0 = arith.constant 0 : i32
    %c0_i32_1 = arith.constant 0 : i32
    return %c0_i32, %c0_i32_0 : i32, i32
  }
  func.func @transform_5(%arg0: i32) -> (i32, i32) {
    %c0_i32 = arith.constant 0 : i32
    %c0_i32_0 = arith.constant 0 : i32
    return %c0_i32, %arg0 : i32, i32
  }
}

</mosaic_0001>

<llo_original>
// kernel: tpu_custom_call.1
$region0: #{tpu_custom_call.1}
  #allocation0 [shape = 'u32[]', space=smem, size = 0x4, offset = 0x4, fixed_abs, tag = 'smem constant byte address 0x4 - core index']
  #allocation1 [shape = 'u32[144,128]{1,0:T(1,128)}', space=vmem, size = 0x12000, scoped, tag = 'internal scratch']
  %s0 = inlined_call_operand.vmem [shape: bf16[32,8], index: 0, kind: input, shape index: {}]
  %s1 = inlined_call_operand.vmem [shape: bf16[64,32], index: 1, kind: input, shape index: {}]
  %s2 = inlined_call_operand.vmem [shape: bf16[32,32], index: 2, kind: input, shape index: {}]
  %s3 = inlined_call_operand.vmem [shape: bf16[64,32], index: 3, kind: input, shape index: {}]
  %s4 = inlined_call_operand.vmem [shape: f32[96,1], index: 4, kind: input, shape index: {}]
  %s5 = inlined_call_operand.hbm [shape: f32[1,8], index: 5, kind: output, shape index: {}]
  %s6 = sld [smem:[#allocation0]]
  $region30: #{tpu_custom_call.1} parent=0
    _
  %s8 = ssub.s32 1, %s6
  %s9 = scalar_select 0, %s8, %s6
  $region1: #{tpu_custom_call.1} parent=0
    #allocation2 [shape = 'u8[512]{0}', space=vmem, size = 0x400, scoped, tag = 'output window, operand 0, single buffered']
    #allocation3 [shape = 's32[1]{0}', space=sflag, size = 0x4, scoped, tag = 'scoped memory for tpu_custom_call.1']
    %10 = vsyncpa [#allocation3], 0
    // Predicated region
    $region2: #{tpu_custom_call.1} parent=1 // pred_check
      _
    $region3: #{tpu_custom_call.1} parent=1 // pred_check_branch
      %12 = sbr.rel (0) target = $region5
    $region4: #{tpu_custom_call.1} parent=1 // pred_region
      _
    $region5: #{tpu_custom_call.1} parent=1 // pred_fallthru
      _
    // Predicated region
    $region6: #{tpu_custom_call.1} parent=1 // pred_check
      _
    $region7: #{tpu_custom_call.1} parent=1 // pred_check_branch
      %14 = sbr.rel (0) target = $region9
    $region8: #{tpu_custom_call.1} parent=1 // pred_region
      _
    $region9: #{tpu_custom_call.1} parent=1 // pred_fallthru
      _
    // Predicated region
    $region10: #{tpu_custom_call.1} parent=1 // pred_check
      _
    $region11: #{tpu_custom_call.1} parent=1 // pred_check_branch
      %16 = sbr.rel (0) target = $region13
    $region12: #{tpu_custom_call.1} parent=1 // pred_region
      _
    $region13: #{tpu_custom_call.1} parent=1 // pred_fallthru
      _
    // Predicated region
    $region14: #{tpu_custom_call.1} parent=1 // pred_check
      _
    $region15: #{tpu_custom_call.1} parent=1 // pred_check_branch
      %18 = sbr.rel (0) target = $region17
    $region16: #{tpu_custom_call.1} parent=1 // pred_region
      _
    $region17: #{tpu_custom_call.1} parent=1 // pred_fallthru
      _
    // Predicated region
    $region18: #{tpu_custom_call.1} parent=1 // pred_check
      _
    $region19: #{tpu_custom_call.1} parent=1 // pred_check_branch
      %20 = sbr.rel (0) target = $region21
    $region20: #{tpu_custom_call.1} parent=1 // pred_region
      _
    $region21: #{tpu_custom_call.1} parent=1 // pred_fallthru
      _
    %v22 = vld [vmem:[%s0] sm:$0xf]
    %v23 = vld [vmem:[%s0 + $0x4] sm:$0xf]
    %v24 = vld [vmem:[%s0 + $0x8] sm:$0xf]
    %v25 = vld [vmem:[%s0 + $0xc] sm:$0xf]
    %v26 = vunpack.c.l.bf16 %v22
    %v27 = vunpack.c.l.bf16 %v23
    %v28 = vunpack.c.l.bf16 %v24
    %v29 = vunpack.c.l.bf16 %v25
    %v30 = vmul.f32 %v26, %v26
    %v31 = vmul.f32 %v27, %v27
    %v32 = vmul.f32 %v28, %v28
    %v33 = vmul.f32 %v29, %v29
    %v34 = vpack.c.bf16 %v31, %v30
    %v35 = vpack.c.bf16 %v33, %v32
    %v36 = vld [vmem:[%s1] sm:$0xf]
    %v37 = vld [vmem:[%s1 + $0x4] sm:$0xf]
    %v38 = vld [vmem:[%s1 + $0x8] sm:$0xf]
    %v39 = vld [vmem:[%s1 + $0xc] sm:$0xf]
    %v40 = vld [vmem:[%s1 + $0x10] sm:$0xf]
    %v41 = vld [vmem:[%s1 + $0x14] sm:$0xf]
    %v42 = vld [vmem:[%s1 + $0x18] sm:$0xf]
    %v43 = vld [vmem:[%s1 + $0x1c] sm:$0xf]
    %v52 = vunpack.c.l.b16 %v36
    %v53 = vunpack.c.l.b16 %v37
    %v54 = vunpack.c.l.b16 %v38
    %v55 = vunpack.c.l.b16 %v39
    %v56 = vunpack.c.l.b16 %v40
    %v57 = vunpack.c.l.b16 %v41
    %v58 = vunpack.c.l.b16 %v42
    %v59 = vunpack.c.l.b16 %v43
    %v60 = vpack.c.b16 %v53, %v52
    %v61 = vpack.c.b16 %v55, %v54
    %v62 = vpack.c.b16 %v57, %v56
    %v63 = vpack.c.b16 %v59, %v58
    %v68 = vunpack.c.l.b16 %v22
    %v69 = vunpack.c.l.b16 %v23
    %v70 = vunpack.c.l.b16 %v24
    %v71 = vunpack.c.l.b16 %v25
    %v72 = vpack.c.b16 %v69, %v68
    %v73 = vpack.c.b16 %v71, %v70
    %vm76 = vcmask 261120
    %v78 = vsel %vm76, %v60, 0
    %v81 = vsel %vm76, %v61, 0
    %v84 = vsel %vm76, %v62, 0
    %v87 = vsel %vm76, %v63, 0
    %89 = vmatprep.subr.bf16.mxu0 0
    %90 = vmatpush1.bf16.msra.mxu0 %v72
    %91 = vmatprep.subr.bf16.mxu0 0
    %92 = vmatpush1.bf16.msra.mxu0 %v73
    %93 = vmatprep.subr.bf16.mxu0 0
    %94 = vmatpush1.bf16.msra.mxu0 0
    %95 = vmatprep.subr.bf16.mxu0 0
    %96 = vmatpush1.bf16.msra.mxu0 0
    %97 = vmatprep.subr.bf16.mxu0 0
    %98 = vmatpush1.bf16.msra.mxu0 0
    %99 = vmatprep.subr.bf16.mxu0 0
    %100 = vmatpush1.bf16.msra.mxu0 0
    %101 = vmatprep.subr.bf16.mxu0 0
    %102 = vmatpush1.bf16.msra.mxu0 0
    %103 = vmatprep.subr.bf16.mxu0 0
    %104 = vmatpush1.bf16.msra.mxu0 0
    %105 = vmatprep.subr.bf16.mxu0 0
    %106 = vmatpush1.bf16.msra.mxu0 0
    %107 = vmatprep.subr.bf16.mxu0 0
    %108 = vmatpush1.bf16.msra.mxu0 0
    %109 = vmatprep.subr.bf16.mxu0 0
    %110 = vmatpush1.bf16.msra.mxu0 0
    %111 = vmatprep.subr.bf16.mxu0 0
    %112 = vmatpush1.bf16.msra.mxu0 0
    %113 = vmatprep.subr.bf16.mxu0 0
    %114 = vmatpush1.bf16.msra.mxu0 0
    %115 = vmatprep.subr.bf16.mxu0 0
    %116 = vmatpush1.bf16.msra.mxu0 0
    %117 = vmatprep.subr.bf16.mxu0 0
    %118 = vmatpush1.bf16.msra.mxu0 0
    %119 = vmatprep.subr.bf16.mxu0 0
    %120 = vmatpush1.bf16.msra.mxu0 0
    %121 = vmatprep.mubr.bf16.mxu0 0
    %122 = vmatmul.mubr.bf16.gmra.mrb[0].mxu0 %v78
    %v123 = vpop.f32.mrb[0].mxu0
    %v124 = vadd.f32 0.0, %v123
    %v125 = vpop.f32.mrb[0].mxu0
    %v126 = vpop.f32.mrb[0].mxu0
    %v127 = vadd.f32 0.0, %v126
    %v128 = vpop.f32.mrb[0].mxu0
    %129 = vmatprep.mubr.bf16.mxu0 0
    %130 = vmatmul.mubr.bf16.gmra.mrb[0].mxu0 %v81
    %v131 = vpop.f32.mrb[0].mxu0
    %v132 = vadd.f32 0.0, %v131
    %v133 = vpop.f32.mrb[0].mxu0
    %v134 = vpop.f32.mrb[0].mxu0
    %v135 = vadd.f32 0.0, %v134
    %v136 = vpop.f32.mrb[0].mxu0
    %137 = vmatprep.mubr.bf16.mxu0 0
    %138 = vmatmul.mubr.bf16.gmra.mrb[0].mxu0 %v84
    %v139 = vpop.f32.mrb[0].mxu0
    %v140 = vadd.f32 0.0, %v139
    %v141 = vpop.f32.mrb[0].mxu0
    %v142 = vpop.f32.mrb[0].mxu0
    %v143 = vadd.f32 0.0, %v142
    %v144 = vpop.f32.mrb[0].mxu0
    %145 = vmatprep.mubr.bf16.mxu0 0
    %146 = vmatmul.mubr.bf16.gmra.mrb[0].mxu0 %v87
    %v147 = vpop.f32.mrb[0].mxu0
    %v148 = vadd.f32 0.0, %v147
    %v149 = vpop.f32.mrb[0].mxu0
    %v150 = vpop.f32.mrb[0].mxu0
    %v151 = vadd.f32 0.0, %v150
    %v152 = vpop.f32.mrb[0].mxu0
    %153 = vdwg.mxu0
    %v154 = vld [vmem:[%s2] sm:$0xf]
    %v155 = vld [vmem:[%s2 + $0x4] sm:$0xf]
    %v156 = vld [vmem:[%s2 + $0x8] sm:$0xf]
    %v157 = vld [vmem:[%s2 + $0xc] sm:$0xf]
    %v162 = vunpack.c.l.b16 %v154
    %v163 = vunpack.c.l.b16 %v155
    %v164 = vunpack.c.l.b16 %v156
    %v165 = vunpack.c.l.b16 %v157
    %v166 = vpack.c.b16 %v163, %v162
    %v167 = vpack.c.b16 %v165, %v164
    %v169 = vsel %vm76, %v166, 0
    %v172 = vsel %vm76, %v167, 0
    %174 = vmatprep.subr.bf16.mxu0 0
    %175 = vmatpush1.bf16.msra.mxu0 %v34
    %176 = vmatprep.subr.bf16.mxu0 0
    %177 = vmatpush1.bf16.msra.mxu0 %v35
    %178 = vmatprep.subr.bf16.mxu0 0
    %179 = vmatpush1.bf16.msra.mxu0 0
    %180 = vmatprep.subr.bf16.mxu0 0
    %181 = vmatpush1.bf16.msra.mxu0 0
    %182 = vmatprep.subr.bf16.mxu0 0
    %183 = vmatpush1.bf16.msra.mxu0 0
    %184 = vmatprep.subr.bf16.mxu0 0
    %185 = vmatpush1.bf16.msra.mxu0 0
    %186 = vmatprep.subr.bf16.mxu0 0
    %187 = vmatpush1.bf16.msra.mxu0 0
    %188 = vmatprep.subr.bf16.mxu0 0
    %189 = vmatpush1.bf16.msra.mxu0 0
    %190 = vmatprep.subr.bf16.mxu0 0
    %191 = vmatpush1.bf16.msra.mxu0 0
    %192 = vmatprep.subr.bf16.mxu0 0
    %193 = vmatpush1.bf16.msra.mxu0 0
    %194 = vmatprep.subr.bf16.mxu0 0
    %195 = vmatpush1.bf16.msra.mxu0 0
    %196 = vmatprep.subr.bf16.mxu0 0
    %197 = vmatpush1.bf16.msra.mxu0 0
    %198 = vmatprep.subr.bf16.mxu0 0
    %199 = vmatpush1.bf16.msra.mxu0 0
    %200 = vmatprep.subr.bf16.mxu0 0
    %201 = vmatpush1.bf16.msra.mxu0 0
    %202 = vmatprep.subr.bf16.mxu0 0
    %203 = vmatpush1.bf16.msra.mxu0 0
    %204 = vmatprep.subr.bf16.mxu0 0
    %205 = vmatpush1.bf16.msra.mxu0 0
    %206 = vmatprep.mubr.bf16.mxu0 0
    %207 = vmatmul.mubr.bf16.gmra.mrb[0].mxu0 %v169
    %v208 = vpop.f32.mrb[0].mxu0
    %v209 = vadd.f32 0.0, %v208
    %v210 = vpop.f32.mrb[0].mxu0
    %v211 = vpop.f32.mrb[0].mxu0
    %v212 = vadd.f32 0.0, %v211
    %v213 = vpop.f32.mrb[0].mxu0
    %214 = vmatprep.mubr.bf16.mxu0 0
    %215 = vmatmul.mubr.bf16.gmra.mrb[0].mxu0 %v172
    %v216 = vpop.f32.mrb[0].mxu0
    %v217 = vadd.f32 0.0, %v216
    %v218 = vpop.f32.mrb[0].mxu0
    %v219 = vpop.f32.mrb[0].mxu0
    %v220 = vadd.f32 0.0, %v219
    %v221 = vpop.f32.mrb[0].mxu0
    %222 = vdwg.mxu0
    %v223 = vld [vmem:[%s4] sm:$0xff]
    %v224 = vld [vmem:[%s4 + $0x8] sm:$0xff]
    %v225 = vld [vmem:[%s4 + $0x10] sm:$0xff]
    %v226 = vld [vmem:[%s4 + $0x18] sm:$0xff]
    %v227 = vld [vmem:[%s4 + $0x20] sm:$0xff]
    %v228 = vld [vmem:[%s4 + $0x28] sm:$0xff]
    %v229 = vld [vmem:[%s4 + $0x30] sm:$0xff]
    %v230 = vld [vmem:[%s4 + $0x38] sm:$0xff]
    %v231 = vld [vmem:[%s4 + $0x40] sm:$0xff]
    %v232 = vld [vmem:[%s4 + $0x48] sm:$0xff]
    %v233 = vld [vmem:[%s4 + $0x50] sm:$0xff]
    %v234 = vld [vmem:[%s4 + $0x58] sm:$0xff]
    %236 = vset.pattern.permute.xlu0 0
    %237 = vperm.xlu0 %236, %v223
    %v238 = vpop.permute.xlu0 %237
    %241 = vset.pattern.permute.xlu0 0
    %242 = vperm.xlu0 %241, %v224
    %v243 = vpop.permute.xlu0 %242
    %246 = vset.pattern.permute.xlu0 0
    %247 = vperm.xlu0 %246, %v225
    %v248 = vpop.permute.xlu0 %247
    %251 = vset.pattern.permute.xlu0 0
    %252 = vperm.xlu0 %251, %v226
    %v253 = vpop.permute.xlu0 %252
    %v255 = vadd.f32 %v124, %v238
    %v256 = vadd.f32 %v127, %v243
    %v257 = vadd.f32 %v132, %v248
    %v258 = vadd.f32 %v135, %v253
    %v259 = vmul.f32 %v140, %v140
    %v260 = vmul.f32 %v143, %v143
    %v261 = vmul.f32 %v148, %v148
    %v262 = vmul.f32 %v151, %v151
    %v263 = vmul.f32 %v259, %v209
    %v264 = vmul.f32 %v260, %v212
    %v265 = vmul.f32 %v261, %v217
    %v266 = vmul.f32 %v262, %v220
    %v267 = vadd.f32 %v255, %v263
    %v268 = vadd.f32 %v256, %v264
    %v269 = vadd.f32 %v257, %v265
    %v270 = vadd.f32 %v258, %v266
    %v271 = vpack.c.bf16 %v268, %v267
    %v272 = vpack.c.bf16 %v270, %v269
    %v273 = vld [vmem:[%s3] sm:$0xf]
    %v274 = vld [vmem:[%s3 + $0x4] sm:$0xf]
    %v275 = vld [vmem:[%s3 + $0x8] sm:$0xf]
    %v276 = vld [vmem:[%s3 + $0xc] sm:$0xf]
    %278 = vset.pattern.permute.xlu0 0
    %279 = vperm.xlu0 %278, %v227
    %v280 = vpop.permute.xlu0 %279
    %283 = vset.pattern.permute.xlu0 0
    %284 = vperm.xlu0 %283, %v228
    %v285 = vpop.permute.xlu0 %284
    %288 = vset.pattern.permute.xlu0 0
    %289 = vperm.xlu0 %288, %v229
    %v290 = vpop.permute.xlu0 %289
    %293 = vset.pattern.permute.xlu0 0
    %294 = vperm.xlu0 %293, %v230
    %v295 = vpop.permute.xlu0 %294
    %v301 = vunpack.c.l.b16 %v273
    %v302 = vunpack.c.l.b16 %v274
    %v303 = vunpack.c.l.b16 %v275
    %v304 = vunpack.c.l.b16 %v276
    %v305 = vpack.c.b16 %v302, %v301
    %v306 = vpack.c.b16 %v304, %v303
    %v308 = vsel %vm76, %v305, 0
    %v311 = vsel %vm76, %v306, 0
    %313 = vmatprep.subr.bf16.mxu0 0
    %314 = vmatpush1.bf16.msra.mxu0 %v271
    %315 = vmatprep.subr.bf16.mxu0 0
    %316 = vmatpush1.bf16.msra.mxu0 %v272
    %317 = vmatprep.subr.bf16.mxu0 0
    %318 = vmatpush1.bf16.msra.mxu0 0
    %319 = vmatprep.subr.bf16.mxu0 0
    %320 = vmatpush1.bf16.msra.mxu0 0
    %321 = vmatprep.subr.bf16.mxu0 0
    %322 = vmatpush1.bf16.msra.mxu0 0
    %323 = vmatprep.subr.bf16.mxu0 0
    %324 = vmatpush1.bf16.msra.mxu0 0
    %325 = vmatprep.subr.bf16.mxu0 0
    %326 = vmatpush1.bf16.msra.mxu0 0
    %327 = vmatprep.subr.bf16.mxu0 0
    %328 = vmatpush1.bf16.msra.mxu0 0
    %329 = vmatprep.subr.bf16.mxu0 0
    %330 = vmatpush1.bf16.msra.mxu0 0
    %331 = vmatprep.subr.bf16.mxu0 0
    %332 = vmatpush1.bf16.msra.mxu0 0
    %333 = vmatprep.subr.bf16.mxu0 0
    %334 = vmatpush1.bf16.msra.mxu0 0
    %335 = vmatprep.subr.bf16.mxu0 0
    %336 = vmatpush1.bf16.msra.mxu0 0
    %337 = vmatprep.subr.bf16.mxu0 0
    %338 = vmatpush1.bf16.msra.mxu0 0
    %339 = vmatprep.subr.bf16.mxu0 0
    %340 = vmatpush1.bf16.msra.mxu0 0
    %341 = vmatprep.subr.bf16.mxu0 0
    %342 = vmatpush1.bf16.msra.mxu0 0
    %343 = vmatprep.subr.bf16.mxu0 0
    %344 = vmatpush1.bf16.msra.mxu0 0
    %345 = vmatprep.mubr.bf16.mxu0 0
    %346 = vmatmul.mubr.bf16.gmra.mrb[0].mxu0 %v308
    %v347 = vpop.f32.mrb[0].mxu0
    %v348 = vadd.f32 %v280, %v347
    %v349 = vpop.f32.mrb[0].mxu0
    %v350 = vpop.f32.mrb[0].mxu0
    %v351 = vadd.f32 %v285, %v350
    %v352 = vpop.f32.mrb[0].mxu0
    %353 = vmatprep.mubr.bf16.mxu0 0
    %354 = vmatmul.mubr.bf16.gmra.mrb[0].mxu0 %v311
    %v355 = vpop.f32.mrb[0].mxu0
    %v356 = vadd.f32 %v290, %v355
    %v357 = vpop.f32.mrb[0].mxu0
    %v358 = vpop.f32.mrb[0].mxu0
    %v359 = vadd.f32 %v295, %v358
    %v360 = vpop.f32.mrb[0].mxu0
    %361 = vdwg.mxu0
    %v362 = vmax.f32 %v348, 0.0
    %v363 = vmax.f32 %v351, 0.0
    %v364 = vmax.f32 %v356, 0.0
    %v365 = vmax.f32 %v359, 0.0
    %v366 = vld [vmem:[%s3 + $0x10] sm:$0xf]
    %v367 = vld [vmem:[%s3 + $0x14] sm:$0xf]
    %v368 = vld [vmem:[%s3 + $0x18] sm:$0xf]
    %v369 = vld [vmem:[%s3 + $0x1c] sm:$0xf]
    %v370 = vpack.c.bf16 %v363, %v362
    %v371 = vpack.c.bf16 %v365, %v364
    %373 = vset.pattern.permute.xlu0 0
    %374 = vperm.xlu0 %373, %v231
    %v375 = vpop.permute.xlu0 %374
    %378 = vset.pattern.permute.xlu0 0
    %379 = vperm.xlu0 %378, %v232
    %v380 = vpop.permute.xlu0 %379
    %383 = vset.pattern.permute.xlu0 0
    %384 = vperm.xlu0 %383, %v233
    %v385 = vpop.permute.xlu0 %384
    %388 = vset.pattern.permute.xlu0 0
    %389 = vperm.xlu0 %388, %v234
    %v390 = vpop.permute.xlu0 %389
    %v396 = vunpack.c.l.b16 %v366
    %v397 = vunpack.c.l.b16 %v367
    %v398 = vunpack.c.l.b16 %v368
    %v399 = vunpack.c.l.b16 %v369
    %v400 = vpack.c.b16 %v397, %v396
    %v401 = vpack.c.b16 %v399, %v398
    %v403 = vsel %vm76, %v400, 0
    %v406 = vsel %vm76, %v401, 0
    %408 = vmatprep.subr.bf16.mxu0 0
    %409 = vmatpush1.bf16.msra.mxu0 %v370
    %410 = vmatprep.subr.bf16.mxu0 0
    %411 = vmatpush1.bf16.msra.mxu0 %v371
    %412 = vmatprep.subr.bf16.mxu0 0
    %413 = vmatpush1.bf16.msra.mxu0 0
    %414 = vmatprep.subr.bf16.mxu0 0
    %415 = vmatpush1.bf16.msra.mxu0 0
    %416 = vmatprep.subr.bf16.mxu0 0
    %417 = vmatpush1.bf16.msra.mxu0 0
    %418 = vmatprep.subr.bf16.mxu0 0
    %419 = vmatpush1.bf16.msra.mxu0 0
    %420 = vmatprep.subr.bf16.mxu0 0
    %421 = vmatpush1.bf16.msra.mxu0 0
    %422 = vmatprep.subr.bf16.mxu0 0
    %423 = vmatpush1.bf16.msra.mxu0 0
    %424 = vmatprep.subr.bf16.mxu0 0
    %425 = vmatpush1.bf16.msra.mxu0 0
    %426 = vmatprep.subr.bf16.mxu0 0
    %427 = vmatpush1.bf16.msra.mxu0 0
    %428 = vmatprep.subr.bf16.mxu0 0
    %429 = vmatpush1.bf16.msra.mxu0 0
    %430 = vmatprep.subr.bf16.mxu0 0
    %431 = vmatpush1.bf16.msra.mxu0 0
    %432 = vmatprep.subr.bf16.mxu0 0
    %433 = vmatpush1.bf16.msra.mxu0 0
    %434 = vmatprep.subr.bf16.mxu0 0
    %435 = vmatpush1.bf16.msra.mxu0 0
    %436 = vmatprep.subr.bf16.mxu0 0
    %437 = vmatpush1.bf16.msra.mxu0 0
    %438 = vmatprep.subr.bf16.mxu0 0
    %439 = vmatpush1.bf16.msra.mxu0 0
    %440 = vmatprep.mubr.bf16.mxu0 0
    %441 = vmatmul.mubr.bf16.gmra.mrb[0].mxu0 %v403
    %v442 = vpop.f32.mrb[0].mxu0
    %v443 = vadd.f32 %v375, %v442
    %v444 = vpop.f32.mrb[0].mxu0
    %v445 = vpop.f32.mrb[0].mxu0
    %v446 = vadd.f32 %v380, %v445
    %v447 = vpop.f32.mrb[0].mxu0
    %448 = vmatprep.mubr.bf16.mxu0 0
    %449 = vmatmul.mubr.bf16.gmra.mrb[0].mxu0 %v406
    %v450 = vpop.f32.mrb[0].mxu0
    %v451 = vadd.f32 %v385, %v450
    %v452 = vpop.f32.mrb[0].mxu0
    %v453 = vpop.f32.mrb[0].mxu0
    %v454 = vadd.f32 %v390, %v453
    %v455 = vpop.f32.mrb[0].mxu0
    %456 = vdwg.mxu0
    %vm457 = vcmask 64512
    %v458 = vsel %vm457, %v443, -inf
    %v459 = vsel %vm457, %v446, -inf
    %v460 = vsel %vm457, %v451, -inf
    %v461 = vsel %vm457, %v454, -inf
    %v462 = vmax.f32 %v458, %v459
    %v463 = vmax.f32 %v460, %v461
    %v464 = vmax.f32 %v462, %v463
    %v465 = vrot.slane %v464, 4
    %v466 = vmax.f32 %v464, %v465
    %v467 = vrot.slane %v466, 2
    %v468 = vmax.f32 %v466, %v467
    %v469 = vrot.slane %v468, 1
    %v470 = vmax.f32 %v468, %v469
    %v471 = vsub.f32 %v443, %v470
    %v472 = vsub.f32 %v446, %v470
    %v473 = vsub.f32 %v451, %v470
    %v474 = vsub.f32 %v454, %v470
    %v475 = vmul.f32 %v471, 1.442695
    %v476 = vpow.pop %v475
    %v477 = vmul.f32 %v472, 1.442695
    %v478 = vpow.pop %v477
    %v479 = vmul.f32 %v473, 1.442695
    %v480 = vpow.pop %v479
    %v481 = vmul.f32 %v474, 1.442695
    %v482 = vpow.pop %v481
    %v483 = vsel %vm457, %v476, 0.0
    %v484 = vsel %vm457, %v478, 0.0
    %v485 = vadd.f32 %v483, %v484
    %v486 = vsel %vm457, %v480, 0.0
    %v487 = vadd.f32 %v485, %v486
    %v488 = vsel %vm457, %v482, 0.0
    %v489 = vadd.f32 %v487, %v488
    %v490 = vrot.slane %v489, 4
    %v491 = vadd.f32 %v489, %v490
    %v492 = vrot.slane %v491, 2
    %v493 = vadd.f32 %v491, %v492
    %v494 = vrot.slane %v493, 1
    %v495 = vadd.f32 %v493, %v494
    %v496 = vrcp.pop %v495
    %v497 = vmul.f32 %v476, %v496
    %v498 = vmul.f32 %v478, %v496
    %v499 = vmul.f32 %v480, %v496
    %v500 = vmul.f32 %v482, %v496
    %v501 = vmul.f32 %v497, %v267
    %v502 = vmul.f32 %v498, %v268
    %v503 = vmul.f32 %v499, %v269
    %v504 = vmul.f32 %v500, %v270
    %v505 = vsel %vm457, %v501, 0.0
    %v506 = vsel %vm457, %v502, 0.0
    %v507 = vadd.f32 %v505, %v506
    %v508 = vsel %vm457, %v503, 0.0
    %v509 = vadd.f32 %v507, %v508
    %v510 = vsel %vm457, %v504, 0.0
    %v511 = vadd.f32 %v509, %v510
    %v512 = vrot.slane %v511, 4
    %v513 = vadd.f32 %v511, %v512
    %v514 = vrot.slane %v513, 2
    %v515 = vadd.f32 %v513, %v514
    %v516 = vrot.slane %v515, 1
    %v517 = vadd.f32 %v515, %v516
    %vm518 = vcmask 57344
    %519 = vst.msk [vmem:[#allocation2] sm:$0x1] %vm518, %v517
    // Predicated region
    $region22: #{tpu_custom_call.1} parent=1 // pred_check
      _
    $region23: #{tpu_custom_call.1} parent=1 // pred_check_branch
      %521 = sbr.rel (0) target = $region25
    $region24: #{tpu_custom_call.1} parent=1 // pred_region
      %s523 = ssub.s32 16, 16
      %524 = vsyncadd [#allocation3], %s523
      %s526 = sshll.u32 [#allocation2], 4
      %s527 = int_to_ptr.vmem [resolvable:$true] %s526
      %529 = dma.vmem_to_hbm [thread:$0]  %s527, 16, %s5, [#allocation3]
    $region25: #{tpu_custom_call.1} parent=1 // pred_fallthru
      _
    // Predicated region
    $region26: #{tpu_custom_call.1} parent=1 // pred_check
      _
    $region27: #{tpu_custom_call.1} parent=1 // pred_check_branch
      %531 = sbr.rel (0) target = $region29
    $region28: #{tpu_custom_call.1} parent=1 // pred_region
      %532 = dma.done [#allocation3], 16
    $region29: #{tpu_custom_call.1} parent=1 // pred_fallthru
      _
    %533 = vsyncpa [#allocation3], 1

</llo_original>
